<compile_context>
chip_gen: v7x
topology: tpu7x:2x2x1
jax: 0.10.0
libtpu: 0.0.40
codegen_flags: <defaults>
</compile_context>

<pallas_src>
import jax
import jax.numpy as jnp
from jax.experimental import pallas as pl
from jax.experimental.pallas import tpu as pltpu


def _round_up(x, m):
    return ((x + m - 1) // m) * m


def _cdiv(a, b):
    return (a + b - 1) // b


def t2v_kernel(tau_ref, w_ref, b_ref, mask_ref, o_ref):
    # tau_ref: (TM, K)  w_ref: (K, N)  b_ref: (1, N)  mask_ref: (1, N)  o_ref: (TM, N)
    y = jnp.dot(tau_ref[...], w_ref[...], preferred_element_type=jnp.float32)
    y = y + b_ref[...]  # broadcast bias over rows
    # mask is 1.0 on "sin" columns, 0.0 on the linear (w0) column and padding.
    o_ref[...] = jnp.where(mask_ref[...] != 0.0, jnp.sin(y), y).astype(o_ref.dtype)


def sine_activation(tau, w, b, w0, b0, *, tb_target=32768, out_dtype=jnp.float32):
    """tau: (B, in_features) f32; returns (B, out_features) of out_dtype."""
    B, in_features = tau.shape
    n_sin = w.shape[1]
    out_features = n_sin + 1
    itemsize = 4

    tau = tau.astype(jnp.float32)

    # ---- Fuse parameters: W = [w | w0], Bv = [b | b0] ----------------------
    W = jnp.concatenate([w, w0], axis=-1).astype(jnp.float32)                  # (IN, OUT)
    Bv = jnp.concatenate(
        [jnp.asarray(b).reshape(-1), jnp.asarray(b0).reshape(-1)]
    ).astype(jnp.float32)                                                       # (OUT,)

    # ---- Lane-dense output: pad columns to a divisor/multiple of 128 -------
    if out_features <= 128:
        out_pad = 1
        while out_pad < out_features:
            out_pad *= 2                       # smallest power of two >= OUT (divides 128)
        pack = 128 // out_pad                  # pack rows so pack*out_pad == 128
    else:
        out_pad = _round_up(out_features, 128)
        pack = 1

    pad_cols = out_pad - out_features
    if pad_cols:
        W = jnp.pad(W, ((0, 0), (0, pad_cols)))        # zero columns, sliced off below
        Bv = jnp.pad(Bv, ((0, pad_cols),))
    Bv = Bv.reshape(1, out_pad)
    mask = (jnp.arange(out_pad) < n_sin).astype(jnp.float32).reshape(1, out_pad)

    K = in_features * pack
    N = out_pad * pack                                   # 128 whenever OUT <= 128
    if pack > 1:
        # Block-diagonal fused weight: W_blk[g*IN + k, g*OUT_pad + j] = W[k, j]
        eye = jnp.eye(pack, dtype=jnp.float32)
        W_blk = jnp.einsum("gh,kj->gkhj", eye, W).reshape(K, N)
        Bv_blk = jnp.tile(Bv, (1, pack))
        mask_blk = jnp.tile(mask, (1, pack))
    else:
        W_blk, Bv_blk, mask_blk = W, Bv, mask

    # ---- Batch tiling: bounded padding, >=2 steps when possible ------------
    row_align = 8 * pack                      # original rows per sublane-aligned packed block
    Bp0 = _round_up(B, row_align)

    # VMEM cap: double-buffered tau + out blocks (+ resident params) < ~24 MiB,
    # leaving headroom under the 32 MiB explicit limit (safe on v7x's 64 MiB).
    vmem_budget = 24 * 1024 * 1024
    resident = 2 * (K * N + 2 * N) * itemsize
    per_row_packed = 2 * (K + N) * itemsize   # bytes per packed output row (tau + out, x2 buf)
    tm_cap = max(8, (vmem_budget - resident) // per_row_packed)
    tb_cap = max(row_align, (tm_cap // 8) * 8 * pack)

    tb_cand = max(row_align, min(_round_up(tb_target, row_align), tb_cap))

    min_steps = 2 if Bp0 >= 2 * row_align else 1     # keep both v7x TensorCores busy
    g = max(min_steps, _cdiv(Bp0, tb_cand))
    g = min(g, Bp0 // row_align)                     # never below row_align rows per step
    tb = _round_up(_cdiv(Bp0, g), row_align)         # rows per step (multiple of row_align)
    Bp = g * tb                                      # padding bounded by ~g*row_align rows

    if Bp != B:
        tau = jnp.pad(tau, ((0, Bp - B), (0, 0)))    # zero rows, sliced off below

    # Same bytes, lane-dense view: (Bp, IN) -> (Bp/pack, pack*IN)
    tau_p = tau.reshape(Bp // pack, K)
    tm = tb // pack                                  # packed rows per tile (multiple of 8)

    cost = pl.CostEstimate(
        flops=2 * B * in_features * out_features,
        transcendentals=B * n_sin,
        bytes_accessed=(B * (in_features + out_features)
                        + in_features * out_features + out_features) * itemsize,
    )

    out_packed = pl.pallas_call(
        t2v_kernel,
        out_shape=jax.ShapeDtypeStruct((Bp // pack, N), out_dtype),
        grid_spec=pltpu.PrefetchScalarGridSpec(
            num_scalar_prefetch=0,
            grid=(g,),
            in_specs=[
                pl.BlockSpec((tm, K), lambda i: (i, 0)),   # tau tile (pipelined)
                pl.BlockSpec((K, N), lambda i: (0, 0)),    # fused weight (resident)
                pl.BlockSpec((1, N), lambda i: (0, 0)),    # fused bias (resident)
                pl.BlockSpec((1, N), lambda i: (0, 0)),    # sin mask (resident)
            ],
            out_specs=pl.BlockSpec((tm, N), lambda i: (i, 0)),
        ),
        compiler_params=pltpu.CompilerParams(
            dimension_semantics=("parallel",),
            vmem_limit_bytes=32 * 1024 * 1024,
        ),
        cost_estimate=cost,
    )(tau_p, W_blk, Bv_blk, mask_blk)

    # Undo lane-dense view, drop padded rows and padded columns.
    return out_packed.reshape(Bp, out_pad)[:B, :out_features]


def sine_activation_ref(tau, w, b, w0, b0):
    v1 = jnp.sin(tau @ w + b)
    v2 = tau @ w0 + b0
    return jnp.concatenate([v1, v2], axis=-1)


if __name__ == "__main__":
    key = jax.random.PRNGKey(0)

    def make_params(k, in_f, out_f):
        k_w0, k_b0, k_w, k_b = jax.random.split(k, 4)
        w0 = jax.random.normal(k_w0, (in_f, 1), dtype=jnp.float32)
        b0 = jax.random.normal(k_b0, (1,), dtype=jnp.float32)
        w = jax.random.normal(k_w, (in_f, out_f - 1), dtype=jnp.float32)
        b = jax.random.normal(k_b, (out_f - 1,), dtype=jnp.float32)
        return w, b, w0, b0

    k1, k2, k3, k4 = jax.random.split(key, 4)

    # Case 1: OUT divides 128 (pack=4), small aligned batch.
    B, IN, OUT = 8, 4, 32
    w, b, w0, b0 = make_params(k1, IN, OUT)
    tau = jax.random.normal(k2, (B, IN), dtype=jnp.float32)
    out = jax.block_until_ready(sine_activation(tau, w, b, w0, b0))
    ref = sine_activation_ref(tau, w, b, w0, b0)
    assert out.shape == (B, OUT), out.shape
    assert jnp.allclose(out, ref, atol=1e-5, rtol=1e-5), float(jnp.max(jnp.abs(out - ref)))

    # Case 2: unaligned batch -> exercises row padding and a 2-step parallel grid.
    B2 = 50
    tau2 = jax.random.normal(k3, (B2, IN), dtype=jnp.float32)
    out2 = jax.block_until_ready(sine_activation(tau2, w, b, w0, b0))
    ref2 = sine_activation_ref(tau2, w, b, w0, b0)
    assert out2.shape == (B2, OUT), out2.shape
    assert jnp.allclose(out2, ref2, atol=1e-5, rtol=1e-5), float(jnp.max(jnp.abs(out2 - ref2)))

    # Case 3: OUT does not divide 128 -> column-padded lane-dense path (pack=2).
    B3, IN3, OUT3 = 20, 4, 48
    w3, b3, w30, b30 = make_params(k4, IN3, OUT3)
    tau3 = jax.random.normal(k2, (B3, IN3), dtype=jnp.float32)
    out3 = jax.block_until_ready(sine_activation(tau3, w3, b3, w30, b30))
    ref3 = sine_activation_ref(tau3, w3, b3, w30, b30)
    assert out3.shape == (B3, OUT3), out3.shape
    assert jnp.allclose(out3, ref3, atol=1e-5, rtol=1e-5), float(jnp.max(jnp.abs(out3 - ref3)))

    print("KERNEL_OK")
</pallas_src>

<mosaic_0001>
module attributes {stable_mosaic.version = 11 : i64} {
  func.func @t2v_kernel(%arg0: i32, %arg1: memref<8x16xf32, #tpu.memory_space<vmem>>, %arg2: memref<16x128xf32, #tpu.memory_space<vmem>>, %arg3: memref<1x128xf32, #tpu.memory_space<vmem>>, %arg4: memref<1x128xf32, #tpu.memory_space<vmem>>, %arg5: memref<8x128xf32, #tpu.memory_space<vmem>>) attributes {dimension_semantics = [#tpu.dimension_semantics<parallel>], iteration_bounds = array<i64: 1>, scalar_prefetch = 0 : i64, scratch_operands = 0 : i64, tpu.core_type = #tpu.core_type<tc>, window_params = [{transform_indices = @transform_0, window_bounds = array<i64: 8, 16>}, {pipeline_mode = #tpu.pipeline_mode<synchronous>, transform_indices = @transform_1, window_bounds = array<i64: 16, 128>}, {pipeline_mode = #tpu.pipeline_mode<synchronous>, transform_indices = @transform_2, window_bounds = array<i64: 1, 128>}, {pipeline_mode = #tpu.pipeline_mode<synchronous>, transform_indices = @transform_3, window_bounds = array<i64: 1, 128>}, {transform_indices = @transform_4, window_bounds = array<i64: 8, 128>}]} {
    %c0 = arith.constant 0 : index
    %c0_0 = arith.constant 0 : index
    %0 = vector.load %arg1[%c0, %c0_0] : memref<8x16xf32, #tpu.memory_space<vmem>>, vector<8x16xf32>
    %c0_1 = arith.constant 0 : index
    %c0_2 = arith.constant 0 : index
    %1 = vector.load %arg2[%c0_1, %c0_2] : memref<16x128xf32, #tpu.memory_space<vmem>>, vector<16x128xf32>
    %cst = arith.constant dense<0.000000e+00> : vector<8x128xf32>
    %2 = tpu.matmul %0, %1, %cst {dimension_numbers = #tpu.dot_dimension_numbers<[1], [0], [0], [1], [0, 0, 1, 1], [], []>} : vector<8x16xf32>, vector<16x128xf32>, vector<8x128xf32> -> vector<8x128xf32>
    %c0_3 = arith.constant 0 : index
    %c0_4 = arith.constant 0 : index
    %3 = vector.load %arg3[%c0_3, %c0_4] : memref<1x128xf32, #tpu.memory_space<vmem>>, vector<1x128xf32>
    %4 = vector.broadcast %3 : vector<1x128xf32> to vector<8x128xf32>
    %5 = arith.addf %2, %4 : vector<8x128xf32>
    %c0_5 = arith.constant 0 : index
    %c0_6 = arith.constant 0 : index
    %6 = vector.load %arg4[%c0_5, %c0_6] : memref<1x128xf32, #tpu.memory_space<vmem>>, vector<1x128xf32>
    %cst_7 = arith.constant 0.000000e+00 : f32
    %7 = vector.broadcast %cst_7 : f32 to vector<1x128xf32>
    %8 = arith.cmpf one, %6, %7 : vector<1x128xf32>
    %9 = math.sin %5 : vector<8x128xf32>
    %10 = vector.shape_cast %8 : vector<1x128xi1> to vector<1x128xi1>
    %11 = vector.broadcast %10 : vector<1x128xi1> to vector<8x128xi1>
    %12 = arith.select %11, %9, %5 : vector<8x128xi1>, vector<8x128xf32>
    %c0_8 = arith.constant 0 : index
    %c0_9 = arith.constant 0 : index
    %13 = vector.load %arg5[%c0_8, %c0_9] : memref<8x128xf32, #tpu.memory_space<vmem>>, vector<8x128xf32>
    tpu.vector_store %arg5[%c0_8, %c0_9], %12 {strides = array<i32>} : memref<8x128xf32, #tpu.memory_space<vmem>>, vector<8x128xf32>,
    return
  }
  func.func @transform_0(%arg0: i32) -> (i32, i32) {
    %c0_i32 = arith.constant 0 : i32
    %c0_i32_0 = arith.constant 0 : i32
    return %arg0, %c0_i32 : i32, i32
  }
  func.func @transform_1(%arg0: i32) -> (i32, i32) {
    %c0_i32 = arith.constant 0 : i32
    %c0_i32_0 = arith.constant 0 : i32
    %c0_i32_1 = arith.constant 0 : i32
    return %c0_i32, %c0_i32_0 : i32, i32
  }
  func.func @transform_2(%arg0: i32) -> (i32, i32) {
    %c0_i32 = arith.constant 0 : i32
    %c0_i32_0 = arith.constant 0 : i32
    %c0_i32_1 = arith.constant 0 : i32
    return %c0_i32, %c0_i32_0 : i32, i32
  }
  func.func @transform_3(%arg0: i32) -> (i32, i32) {
    %c0_i32 = arith.constant 0 : i32
    %c0_i32_0 = arith.constant 0 : i32
    %c0_i32_1 = arith.constant 0 : i32
    return %c0_i32, %c0_i32_0 : i32, i32
  }
  func.func @transform_4(%arg0: i32) -> (i32, i32) {
    %c0_i32 = arith.constant 0 : i32
    %c0_i32_0 = arith.constant 0 : i32
    return %arg0, %c0_i32 : i32, i32
  }
}

</mosaic_0001>

<llo_original>
// kernel: tpu_custom_call.1
$region0: #{tpu_custom_call.1}
  #allocation0 [shape = 'u32[]', space=smem, size = 0x4, offset = 0x4, fixed_abs, tag = 'smem constant byte address 0x4 - core index']
  #allocation1 [shape = 'u32[144,128]{1,0:T(1,128)}', space=vmem, size = 0x12000, scoped, tag = 'internal scratch']
  %s0 = inlined_call_operand.hbm [shape: f32[8,16], index: 0, kind: input, shape index: {}]
  %s1 = inlined_call_operand.hbm [shape: f32[16,128], index: 1, kind: input, shape index: {}]
  %s2 = inlined_call_operand.vmem [shape: f32[1,128], index: 2, kind: input, shape index: {}]
  %s3 = inlined_call_operand.vmem [shape: f32[1,128], index: 3, kind: input, shape index: {}]
  %s4 = inlined_call_operand.hbm [shape: f32[8,128], index: 4, kind: output, shape index: {}]
  %s5 = sld [smem:[#allocation0]]
  $region34: #{tpu_custom_call.1} parent=0
    _
  %s7 = ssub.s32 1, %s5
  %s8 = scalar_select 0, %s7, %s5
  $region1: #{tpu_custom_call.1} parent=0
    #allocation2 [shape = 'u8[4096]{0}', space=vmem, size = 0x1000, scoped, tag = 'input window, operand 0, single buffered']
    #allocation3 [shape = 's32[1]{0}', space=sflag, size = 0x4, scoped, tag = 'scoped memory for tpu_custom_call.1']
    #allocation4 [shape = 's32[1]{0}', space=sflag, size = 0x4, scoped, tag = 'scoped memory for tpu_custom_call.1']
    #allocation5 [shape = 'u8[8192]{0}', space=vmem, size = 0x2000, scoped, tag = 'input window, operand 1, single buffered']
    #allocation6 [shape = 's32[1]{0}', space=sflag, size = 0x4, scoped, tag = 'scoped memory for tpu_custom_call.1']
    #allocation7 [shape = 'u8[4096]{0}', space=vmem, size = 0x1000, scoped, tag = 'output window, operand 0, single buffered']
    %9 = vsyncpa [#allocation3], 0
    %10 = vsyncpa [#allocation6], 0
    %11 = vsyncpa [#allocation4], 0
    // Predicated region
    $region2: #{tpu_custom_call.1} parent=1 // pred_check
      _
    $region3: #{tpu_custom_call.1} parent=1 // pred_check_branch
      %13 = sbr.rel (0) target = $region5
    $region4: #{tpu_custom_call.1} parent=1 // pred_region
      %s15 = ssub.s32 128, 128
      %16 = vsyncadd [#allocation3], %s15
      %s18 = sshll.u32 [#allocation2], 4
      %s19 = int_to_ptr.vmem [resolvable:$true] %s18
      %21 = dma.hbm_to_vmem [thread:$0]  %s0, 128, %s19, [#allocation3]
    $region5: #{tpu_custom_call.1} parent=1 // pred_fallthru
      _
    // Predicated region
    $region6: #{tpu_custom_call.1} parent=1 // pred_check
      _
    $region7: #{tpu_custom_call.1} parent=1 // pred_check_branch
      %23 = sbr.rel (0) target = $region9
    $region8: #{tpu_custom_call.1} parent=1 // pred_region
      %s25 = ssub.s32 256, 256
      %26 = vsyncadd [#allocation6], %s25
      %s27 = sshll.u32 [#allocation5], 4
      %s28 = int_to_ptr.vmem [resolvable:$true] %s27
      %33 = dma.hbm_to_vmem [thread:$0]  %s1, 256, %s28, [#allocation6], 128, 128, 8
    $region9: #{tpu_custom_call.1} parent=1 // pred_fallthru
      _
    // Predicated region
    $region10: #{tpu_custom_call.1} parent=1 // pred_check
      _
    $region11: #{tpu_custom_call.1} parent=1 // pred_check_branch
      %35 = sbr.rel (0) target = $region13
    $region12: #{tpu_custom_call.1} parent=1 // pred_region
      _
    $region13: #{tpu_custom_call.1} parent=1 // pred_fallthru
      _
    // Predicated region
    $region14: #{tpu_custom_call.1} parent=1 // pred_check
      _
    $region15: #{tpu_custom_call.1} parent=1 // pred_check_branch
      %37 = sbr.rel (0) target = $region17
    $region16: #{tpu_custom_call.1} parent=1 // pred_region
      _
    $region17: #{tpu_custom_call.1} parent=1 // pred_fallthru
      _
    // Predicated region
    $region18: #{tpu_custom_call.1} parent=1 // pred_check
      _
    $region19: #{tpu_custom_call.1} parent=1 // pred_check_branch
      %39 = sbr.rel (0) target = $region21
    $region20: #{tpu_custom_call.1} parent=1 // pred_region
      %40 = dma.done [#allocation3], 128
    $region21: #{tpu_custom_call.1} parent=1 // pred_fallthru
      _
    // Predicated region
    $region22: #{tpu_custom_call.1} parent=1 // pred_check
      _
    $region23: #{tpu_custom_call.1} parent=1 // pred_check_branch
      %42 = sbr.rel (0) target = $region25
    $region24: #{tpu_custom_call.1} parent=1 // pred_region
      %43 = dma.done [#allocation6], 256
    $region25: #{tpu_custom_call.1} parent=1 // pred_fallthru
      _
    %v44 = vld [vmem:[#allocation2] sm:$0xff]
    %v45 = vld [vmem:[#allocation5] sm:$0xff]
    %v46 = vld [vmem:[#allocation5 + $0x8] sm:$0xff]
    %v47 = vld [vmem:[%s2] sm:$0x1]
    %v49 = vlaneseq
    %v50 = vshrl.u32 %v49, 7
    %v51 = vsub.s32 0, %v50
    %v52 = vrot.slane %v47, %v51
    %vm54 = vcmask 130048
    %v56 = vsel %vm54, %v44, 0
    %58 = vmatprep.subr.mxu0 0.0
    %59 = vmatpush1.msra.mxu0 %v45
    %60 = vmatprep.subr.mxu0 0.0
    %61 = vmatpush1.msra.mxu0 %v46
    %62 = vmatprep.subr.mxu0 0.0
    %63 = vmatpush1.msra.mxu0 0.0
    %64 = vmatprep.subr.mxu0 0.0
    %65 = vmatpush1.msra.mxu0 0.0
    %66 = vmatprep.subr.mxu0 0.0
    %67 = vmatpush1.msra.mxu0 0.0
    %68 = vmatprep.subr.mxu0 0.0
    %69 = vmatpush1.msra.mxu0 0.0
    %70 = vmatprep.subr.mxu0 0.0
    %71 = vmatpush1.msra.mxu0 0.0
    %72 = vmatprep.subr.mxu0 0.0
    %73 = vmatpush1.msra.mxu0 0.0
    %74 = vmatprep.subr.mxu0 0.0
    %75 = vmatpush1.msra.mxu0 0.0
    %76 = vmatprep.subr.mxu0 0.0
    %77 = vmatpush1.msra.mxu0 0.0
    %78 = vmatprep.subr.mxu0 0.0
    %79 = vmatpush1.msra.mxu0 0.0
    %80 = vmatprep.subr.mxu0 0.0
    %81 = vmatpush1.msra.mxu0 0.0
    %82 = vmatprep.subr.mxu0 0.0
    %83 = vmatpush1.msra.mxu0 0.0
    %84 = vmatprep.subr.mxu0 0.0
    %85 = vmatpush1.msra.mxu0 0.0
    %86 = vmatprep.subr.mxu0 0.0
    %87 = vmatpush1.msra.mxu0 0.0
    %88 = vmatprep.subr.mxu0 0.0
    %89 = vmatpush1.msra.mxu0 0.0
    %90 = vmatprep.subr.mxu0 0.0
    %91 = vmatpush1.msra.mxu0 0.0
    %92 = vmatprep.subr.mxu0 0.0
    %93 = vmatpush1.msra.mxu0 0.0
    %94 = vmatprep.subr.mxu0 0.0
    %95 = vmatpush1.msra.mxu0 0.0
    %96 = vmatprep.subr.mxu0 0.0
    %97 = vmatpush1.msra.mxu0 0.0
    %98 = vmatprep.subr.mxu0 0.0
    %99 = vmatpush1.msra.mxu0 0.0
    %100 = vmatprep.subr.mxu0 0.0
    %101 = vmatpush1.msra.mxu0 0.0
    %102 = vmatprep.subr.mxu0 0.0
    %103 = vmatpush1.msra.mxu0 0.0
    %104 = vmatprep.subr.mxu0 0.0
    %105 = vmatpush1.msra.mxu0 0.0
    %106 = vmatprep.subr.mxu0 0.0
    %107 = vmatpush1.msra.mxu0 0.0
    %108 = vmatprep.subr.mxu0 0.0
    %109 = vmatpush1.msra.mxu0 0.0
    %110 = vmatprep.subr.mxu0 0.0
    %111 = vmatpush1.msra.mxu0 0.0
    %112 = vmatprep.subr.mxu0 0.0
    %113 = vmatpush1.msra.mxu0 0.0
    %114 = vmatprep.subr.mxu0 0.0
    %115 = vmatpush1.msra.mxu0 0.0
    %116 = vmatprep.subr.mxu0 0.0
    %117 = vmatpush1.msra.mxu0 0.0
    %118 = vmatprep.subr.mxu0 0.0
    %119 = vmatpush1.msra.mxu0 0.0
    %120 = vmatprep.subr.mxu0 0.0
    %121 = vmatpush1.msra.mxu0 0.0
    %122 = vmatprep.mubr.f32.mxu0 0.0
    %123 = vmatmul.mubr.f32.gmra.mrb[0].mxu0 %v56
    %v124 = vpop.f32.mrb[0].mxu0
    %v125 = vadd.f32 %v52, %v124
    %v126 = vpop.f32.mrb[0].mxu0
    %127 = vdwg.mxu0
    %v128 = vld [vmem:[%s3] sm:$0x1]
    %vm129 = vcmp.ne.f32.partialorder %v128, 0.0
    %v130 = vand.u32 2147483647, %v125
    %vm131 = vcmp.le.f32.partialorder %v130, 0.7853982
    %vm132 = vcmp.lt.s32.totalorder %v125, 0
    %v133 = vand.u32 %v125, 2139095040
    %v134 = vshrl.u32 %v133, 23
    %v135 = vsub.s32 %v134, 127
    %v136 = vand.u32 2147483647, %v125
    %v137 = vand.u32 %v136, 8388607
    %v138 = vor.u32 %v137, 8388608
    %v139 = vsub.s32 0, %v138
    %v140 = vadd.s32 %v135, 1
    %vm141 = vcmp.gt.s32.totalorder %v140, 0
    %v142 = vsel %vm141, %v140, 0
    %v143 = vshrl.u32 %v142, 5
    %v144 = vand.u32 %v142, 31
    %v145 = vsub.s32 32, %v144
    %v146 = vshrl.u32 683565275, %v145
    %v147 = vshll.u32 683565275, %v144
    %v148 = vshrl.u32 2475754826, %v145
    %v149 = vor.u32 %v147, %v148
    %v150 = vshll.u32 2475754826, %v144
    %v151 = vshrl.u32 2131351028, %v145
    %v152 = vor.u32 %v150, %v151
    %v153 = vshll.u32 2131351028, %v144
    %v154 = vshrl.u32 2102212464, %v145
    %v155 = vor.u32 %v153, %v154
    %v156 = vshll.u32 2102212464, %v144
    %v157 = vshrl.u32 920167782, %v145
    %v158 = vor.u32 %v156, %v157
    %v159 = vshll.u32 920167782, %v144
    %v160 = vshrl.u32 1326507024, %v145
    %v161 = vor.u32 %v159, %v160
    %vm162 = vcmp.lt.s32.totalorder %v143, 1
    %vm163 = vcmp.lt.s32.totalorder %v143, 2
    %vm164 = vcmp.lt.s32.totalorder %v143, 3
    %vm165 = vcmp.lt.s32.totalorder %v143, 4
    %v166 = vsel %vm162, %v146, %v149
    %v167 = vsel %vm165, %v155, 2102212464
    %v168 = vsel %vm164, %v152, %v167
    %v169 = vsel %vm163, %v166, %v168
    %v170 = vsel %vm162, %v149, %v152
    %v171 = vsel %vm165, %v158, 920167782
    %v172 = vsel %vm164, %v155, %v171
    %v173 = vsel %vm163, %v170, %v172
    %v174 = vsel %vm162, %v152, %v155
    %v175 = vsel %vm165, %v161, 1326507024
    %v176 = vsel %vm164, %v158, %v175
    %v177 = vsel %vm163, %v174, %v176
    %v178 = vshll.u32 %v138, 8
    %v179 = vmul.u32.u64.compose %v178, %v177
    %v180 = vextract.low.u32 %v179
    %v181 = vextract.high.u32 %v179
    %v182 = vmul.u32.u64.compose %v178, %v173
    %v183 = vextract.low.u32 %v182
    %v184 = vextract.high.u32 %v182
    %v185 = vmul.u32 %v178, %v169
    %v186 = vadd.s32 %v181, %v183
    %vm187 = vc.u32 %v181, %v183
    %v188 = vadd.s32 %v184, 1
    %v189 = vsel %vm187, %v188, %v184
    %v190 = vadd.s32 %v185, %v189
    %v191 = vadd.s32 %v190, 536870912
    %v192 = vshrl.u32 %v191, 30
    %v193 = vshll.u32 %v192, 30
    %v194 = vsub.s32 %v190, %v193
    %vm195 = vcmp.lt.s32.totalorder %v194, 0
    %v196 = vsub.s32 0, %v194
    %v197 = vsel %vm195, %v196, %v194
    %v198 = vclz %v197
    %v199 = vsub.s32 %v198, 2
    %vm200 = vcmp.gt.s32.totalorder 0, %v199
    %v201 = vsel %vm200, 0, %v199
    %v202 = vsub.s32 32, %v201
    %v203 = vshll.u32 %v194, %v201
    %v204 = vshrl.u32 %v186, %v202
    %v205 = vor.u32 %v203, %v204
    %v206 = vsub.s32 4294967266, %v201
    %v207 = vadd.s32 %v206, 127
    %v208 = vshll.u32 %v207, 23
    %v209 = vor.u32 4788187, %v208
    %v210 = vand.u32 2147483647, %v209
    %v212 = vcvt.s32.f32 %v205
    %v213 = vmul.f32 %v212, %v210
    %v214 = vxor.u32 %v213, 2147483648
    %v215 = vsel %vm132, %v214, %v213
    %v216 = vsub.s32 4, %v192
    %v217 = vsel %vm132, %v216, %v192
    %v218 = vsel %vm131, %v125, %v215
    %v219 = vsel %vm131, 0, %v217
    %v220 = vcosq.f32.pop %v218
    %v221 = vsinq.f32.pop %v218
    %vm222 = vweird.f32 %v125
    %v223 = vadd.s32 %v219, 3
    %v224 = vand.u32 %v223, 3
    %vm225 = vcmp.lt.s32.totalorder %v224, 2
    %vm226 = vcmp.eq.s32.totalorder %v224, 0
    %v227 = vxor.u32 %v221, 2147483648
    %v228 = vsel %vm226, %v220, %v227
    %vm229 = vcmp.eq.s32.totalorder %v224, 2
    %v230 = vxor.u32 %v220, 2147483648
    %v231 = vsel %vm229, %v230, %v221
    %v232 = vsel %vm225, %v228, %v231
    %v233 = vsel %vm222, nan, %v232
    %v234 = vsel %vm129, 1, 0
    %v235 = vlaneseq
    %v236 = vshrl.u32 %v235, 7
    %v237 = vsub.s32 0, %v236
    %v238 = vrot.slane %v234, %v237
    %vm239 = vcmp.eq.s32.totalorder %v238, 1
    %v240 = vsel %vm239, %v233, %v125
    %241 = vst [vmem:[#allocation7] sm:$0xff] %v240
    // Predicated region
    $region26: #{tpu_custom_call.1} parent=1 // pred_check
      _
    $region27: #{tpu_custom_call.1} parent=1 // pred_check_branch
      %243 = sbr.rel (0) target = $region29
    $region28: #{tpu_custom_call.1} parent=1 // pred_region
      %s245 = ssub.s32 128, 128
      %246 = vsyncadd [#allocation4], %s245
      %s248 = sshll.u32 [#allocation7], 4
      %s249 = int_to_ptr.vmem [resolvable:$true] %s248
      %251 = dma.vmem_to_hbm [thread:$0]  %s249, 128, %s4, [#allocation4]
    $region29: #{tpu_custom_call.1} parent=1 // pred_fallthru
      _
    // Predicated region
    $region30: #{tpu_custom_call.1} parent=1 // pred_check
      _
    $region31: #{tpu_custom_call.1} parent=1 // pred_check_branch
      %253 = sbr.rel (0) target = $region33
    $region32: #{tpu_custom_call.1} parent=1 // pred_region
      %254 = dma.done [#allocation4], 128
    $region33: #{tpu_custom_call.1} parent=1 // pred_fallthru
      _
    %255 = vsyncpa [#allocation3], 1
    %256 = vsyncpa [#allocation6], 1
    %257 = vsyncpa [#allocation4], 1

</llo_original>
